<compile_context>
chip_gen: v7x
topology: tpu7x:2x2x1
jax: 0.10.0
libtpu: 0.0.40
codegen_flags: <defaults>
</compile_context>

<pallas_src>
import functools
import math

import jax
import jax.numpy as jnp
from jax.experimental import pallas as pl
from jax.experimental.pallas import tpu as pltpu


# ----------------------------------------------------------------------------
# Kernels
# ----------------------------------------------------------------------------
def _pe_add_iota_kernel(div_ref, phase_ref, x_ref, o_ref, *, tile_rows):
    """position_ids=None path.

    div_ref / phase_ref : [1, D] f32
    x_ref / o_ref       : [B, TS, D]
    Positions are program_id(0)*TS + row index; one PE slab per tile, shared
    across the batch dimension.
    """
    _, TS, D = x_ref.shape
    row = jax.lax.broadcasted_iota(jnp.int32, (TS, D), 0)
    pos = (row + pl.program_id(0) * tile_rows).astype(jnp.float32)   # [TS, D]
    angle = pos * div_ref[...] + phase_ref[...]                       # [TS, D]
    pe = jnp.sin(angle)                                               # [TS, D]
    o_ref[...] = (x_ref[...].astype(jnp.float32) + pe[None, :, :]).astype(o_ref.dtype)


def _pe_add_ids_kernel(div_ref, phase_ref, pos_ref, x_ref, o_ref):
    """Explicit position_ids path.

    div_ref / phase_ref : [1, D] f32
    pos_ref             : [1, TS, 1] int32 (already broadcast-ready layout)
    x_ref / o_ref       : [1, TS, D]
    """
    pos = pos_ref[...].astype(jnp.float32)                            # [1, TS, 1]
    angle = pos * div_ref[...][None] + phase_ref[...][None]           # [1, TS, D]
    pe = jnp.sin(angle)
    o_ref[...] = (x_ref[...].astype(jnp.float32) + pe).astype(o_ref.dtype)


# ----------------------------------------------------------------------------
# Wrapper
# ----------------------------------------------------------------------------
def _pick_rows(seq_len, row_bytes, target_bytes=2 << 20):
    """Rows per tile: keep a block under ~2 MiB, multiple of 8 or == seq_len."""
    rows = max(1, target_bytes // max(1, row_bytes))
    if rows >= seq_len:
        return seq_len
    rows = max(8, (rows // 8) * 8)
    return min(rows, seq_len)


def positional_encoding(x, position_ids=None, max_len=5000):
    """x: [batch, seq_len, d_model]; position_ids: optional [batch, seq_len] int."""
    B, S, D = x.shape
    assert D % 2 == 0, "d_model must be even (as in the PyTorch module)"
    assert S <= max_len

    # Tiny per-lane tables, computed once at trace time:
    #   div_term[j] = 10000 ** (-2*(j//2)/D)
    #   phase[j]    = 0 for even j (sin), pi/2 for odd j (cos == sin(.+pi/2))
    j = jnp.arange(D, dtype=jnp.int32)
    even_j = (j // 2) * 2
    div_term = jnp.exp(even_j.astype(jnp.float32) * (-(math.log(10000.0) / float(D))))
    phase = jnp.where((j % 2) == 0, 0.0, math.pi / 2.0).astype(jnp.float32)
    div_term = div_term.reshape(1, D)
    phase = phase.reshape(1, D)

    itemsize = jnp.dtype(x.dtype).itemsize

    if position_ids is None:
        # One PE slab per seq tile, broadcast over batch inside the kernel.
        rows = _pick_rows(S, 2 * B * D * itemsize + 4 * D)
        grid = (pl.cdiv(S, rows),)
        kernel = functools.partial(_pe_add_iota_kernel, tile_rows=rows)
        return pl.pallas_call(
            kernel,
            out_shape=jax.ShapeDtypeStruct((B, S, D), x.dtype),
            grid=grid,
            in_specs=[
                pl.BlockSpec((1, D), lambda s: (0, 0)),            # div_term
                pl.BlockSpec((1, D), lambda s: (0, 0)),            # phase
                pl.BlockSpec((B, rows, D), lambda s: (0, s, 0)),   # x
            ],
            out_specs=pl.BlockSpec((B, rows, D), lambda s: (0, s, 0)),
            compiler_params=pltpu.CompilerParams(
                dimension_semantics=("parallel",),
            ),
        )(div_term, phase, x)

    # Explicit position ids: tile over (batch, seq).
    position_ids = position_ids.astype(jnp.int32).reshape(B, S, 1)
    rows = _pick_rows(S, 2 * D * itemsize + 4 * D + 4)
    grid = (B, pl.cdiv(S, rows))
    return pl.pallas_call(
        _pe_add_ids_kernel,
        out_shape=jax.ShapeDtypeStruct((B, S, D), x.dtype),
        grid=grid,
        in_specs=[
            pl.BlockSpec((1, D), lambda b, s: (0, 0)),             # div_term
            pl.BlockSpec((1, D), lambda b, s: (0, 0)),             # phase
            pl.BlockSpec((1, rows, 1), lambda b, s: (b, s, 0)),    # position_ids
            pl.BlockSpec((1, rows, D), lambda b, s: (b, s, 0)),    # x
        ],
        out_specs=pl.BlockSpec((1, rows, D), lambda b, s: (b, s, 0)),
        compiler_params=pltpu.CompilerParams(
            dimension_semantics=("parallel", "parallel"),
        ),
    )(div_term, phase, position_ids, x)


# ----------------------------------------------------------------------------
# Pure-JAX reference (port of the PyTorch forward: pe buffer + gather)
# ----------------------------------------------------------------------------
def _reference(x, position_ids=None, max_len=5000):
    B, S, D = x.shape
    position = jnp.arange(max_len, dtype=jnp.float32)[:, None]            # [L, 1]
    div_term = jnp.exp(
        jnp.arange(0, D, 2, dtype=jnp.float32) * -(math.log(10000.0) / D)
    )                                                                      # [D/2]
    ang = position * div_term                                              # [L, D/2]
    pe = jnp.zeros((max_len, D), jnp.float32)
    pe = pe.at[:, 0::2].set(jnp.sin(ang))
    pe = pe.at[:, 1::2].set(jnp.cos(ang))
    if position_ids is None:
        return x + pe[None, :S, :]
    return x + pe[position_ids]                                            # [B, S, D]


if __name__ == "__main__":
    key = jax.random.PRNGKey(0)
    k1, k2 = jax.random.split(key)

    B, S, D = 2, 8, 32
    max_len = 64

    x = jax.random.normal(k1, (B, S, D), dtype=jnp.float32)

    # Case 1: position_ids=None
    out1 = jax.block_until_ready(positional_encoding(x, None, max_len=max_len))
    ref1 = _reference(x, None, max_len=max_len)
    assert out1.shape == (B, S, D) and out1.dtype == jnp.float32
    # Tolerance slightly relaxed: kernel uses sin(t + pi/2) in place of cos(t)
    # (single-transcendental form), which differs from the cos path by a few ulps.
    assert jnp.allclose(out1, ref1, atol=1e-4, rtol=1e-4)

    # Case 2: explicit position_ids
    position_ids = jax.random.randint(k2, (B, S), 0, max_len, dtype=jnp.int32)
    out2 = jax.block_until_ready(
        positional_encoding(x, position_ids, max_len=max_len)
    )
    ref2 = _reference(x, position_ids, max_len=max_len)
    assert jnp.allclose(out2, ref2, atol=1e-4, rtol=1e-4)

    print("KERNEL_OK")
</pallas_src>

<mosaic_0001>
module attributes {stable_mosaic.version = 11 : i64} {
  func.func @_pe_add_iota_kernel(%arg0: i32, %arg1: memref<1x32xf32, #tpu.memory_space<vmem>>, %arg2: memref<1x32xf32, #tpu.memory_space<vmem>>, %arg3: memref<2x8x32xf32, #tpu.memory_space<vmem>>, %arg4: memref<2x8x32xf32, #tpu.memory_space<vmem>>) attributes {dimension_semantics = [#tpu.dimension_semantics<parallel>], iteration_bounds = array<i64: 1>, scalar_prefetch = 0 : i64, scratch_operands = 0 : i64, tpu.core_type = #tpu.core_type<tc>, window_params = [{pipeline_mode = #tpu.pipeline_mode<synchronous>, transform_indices = @transform_0, window_bounds = array<i64: 1, 32>}, {pipeline_mode = #tpu.pipeline_mode<synchronous>, transform_indices = @transform_1, window_bounds = array<i64: 1, 32>}, {transform_indices = @transform_2, window_bounds = array<i64: 2, 8, 32>}, {transform_indices = @transform_3, window_bounds = array<i64: 2, 8, 32>}]} {
    %0 = tpu.iota {dimensions = array<i32: 0>} : vector<8x32xi32>
    %c8_i32 = arith.constant 8 : i32
    %1 = arith.muli %arg0, %c8_i32 : i32
    %2 = vector.broadcast %1 : i32 to vector<8x32xi32>
    %3 = arith.addi %0, %2 : vector<8x32xi32>
    %4 = arith.sitofp %3 : vector<8x32xi32> to vector<8x32xf32>
    %c0 = arith.constant 0 : index
    %c0_0 = arith.constant 0 : index
    %5 = vector.load %arg1[%c0, %c0_0] : memref<1x32xf32, #tpu.memory_space<vmem>>, vector<1x32xf32>
    %6 = vector.broadcast %5 : vector<1x32xf32> to vector<8x32xf32>
    %7 = arith.mulf %4, %6 : vector<8x32xf32>
    %c0_1 = arith.constant 0 : index
    %c0_2 = arith.constant 0 : index
    %8 = vector.load %arg2[%c0_1, %c0_2] : memref<1x32xf32, #tpu.memory_space<vmem>>, vector<1x32xf32>
    %9 = vector.broadcast %8 : vector<1x32xf32> to vector<8x32xf32>
    %10 = arith.addf %7, %9 : vector<8x32xf32>
    %11 = math.sin %10 : vector<8x32xf32>
    %c0_3 = arith.constant 0 : index
    %c0_4 = arith.constant 0 : index
    %c0_5 = arith.constant 0 : index
    %12 = vector.load %arg3[%c0_3, %c0_4, %c0_5] : memref<2x8x32xf32, #tpu.memory_space<vmem>>, vector<2x8x32xf32>
    %13 = vector.shape_cast %11 : vector<8x32xf32> to vector<1x8x32xf32>
    %14 = vector.broadcast %13 : vector<1x8x32xf32> to vector<2x8x32xf32>
    %15 = arith.addf %12, %14 : vector<2x8x32xf32>
    %c0_6 = arith.constant 0 : index
    %c0_7 = arith.constant 0 : index
    %c0_8 = arith.constant 0 : index
    %16 = vector.load %arg4[%c0_6, %c0_7, %c0_8] : memref<2x8x32xf32, #tpu.memory_space<vmem>>, vector<2x8x32xf32>
    tpu.vector_store %arg4[%c0_6, %c0_7, %c0_8], %15 {strides = array<i32>} : memref<2x8x32xf32, #tpu.memory_space<vmem>>, vector<2x8x32xf32>,
    return
  }
  func.func @transform_0(%arg0: i32) -> (i32, i32) {
    %c0_i32 = arith.constant 0 : i32
    %c0_i32_0 = arith.constant 0 : i32
    %c0_i32_1 = arith.constant 0 : i32
    return %c0_i32, %c0_i32_0 : i32, i32
  }
  func.func @transform_1(%arg0: i32) -> (i32, i32) {
    %c0_i32 = arith.constant 0 : i32
    %c0_i32_0 = arith.constant 0 : i32
    %c0_i32_1 = arith.constant 0 : i32
    return %c0_i32, %c0_i32_0 : i32, i32
  }
  func.func @transform_2(%arg0: i32) -> (i32, i32, i32) {
    %c0_i32 = arith.constant 0 : i32
    %c0_i32_0 = arith.constant 0 : i32
    %c0_i32_1 = arith.constant 0 : i32
    return %c0_i32, %arg0, %c0_i32_0 : i32, i32, i32
  }
  func.func @transform_3(%arg0: i32) -> (i32, i32, i32) {
    %c0_i32 = arith.constant 0 : i32
    %c0_i32_0 = arith.constant 0 : i32
    %c0_i32_1 = arith.constant 0 : i32
    return %c0_i32, %arg0, %c0_i32_0 : i32, i32, i32
  }
}

</mosaic_0001>

<llo_original>
// kernel: tpu_custom_call.1
$region0: #{tpu_custom_call.1}
  #allocation0 [shape = 'u32[]', space=smem, size = 0x4, offset = 0x4, fixed_abs, tag = 'smem constant byte address 0x4 - core index']
  #allocation1 [shape = 'u32[144,128]{1,0:T(1,128)}', space=vmem, size = 0x12000, scoped, tag = 'internal scratch']
  %s0 = inlined_call_operand.hbm [shape: f32[1,32], index: 0, kind: input, shape index: {}]
  %s1 = inlined_call_operand.vmem [shape: f32[1,32], index: 1, kind: input, shape index: {}]
  %s2 = inlined_call_operand.hbm [shape: f32[2,8,32], index: 2, kind: input, shape index: {}]
  %s3 = inlined_call_operand.hbm [shape: f32[2,8,32], index: 3, kind: output, shape index: {}]
  %s4 = sld [smem:[#allocation0]]
  $region30: #{tpu_custom_call.1} parent=0
    _
  %s6 = ssub.s32 1, %s4
  %s7 = scalar_select 0, %s6, %s4
  $region1: #{tpu_custom_call.1} parent=0
    #allocation2 [shape = 'u8[512]{0}', space=vmem, size = 0x400, scoped, tag = 'input window, operand 0, single buffered']
    #allocation3 [shape = 's32[1]{0}', space=sflag, size = 0x4, scoped, tag = 'scoped memory for tpu_custom_call.1']
    #allocation4 [shape = 's32[1]{0}', space=sflag, size = 0x4, scoped, tag = 'scoped memory for tpu_custom_call.1']
    #allocation5 [shape = 'u8[8192]{0}', space=vmem, size = 0x2000, scoped, tag = 'input window, operand 2, single buffered']
    #allocation6 [shape = 's32[1]{0}', space=sflag, size = 0x4, scoped, tag = 'scoped memory for tpu_custom_call.1']
    #allocation7 [shape = 'u8[8192]{0}', space=vmem, size = 0x2000, scoped, tag = 'output window, operand 0, single buffered']
    %8 = vsyncpa [#allocation3], 0
    %9 = vsyncpa [#allocation6], 0
    %10 = vsyncpa [#allocation4], 0
    // Predicated region
    $region2: #{tpu_custom_call.1} parent=1 // pred_check
      _
    $region3: #{tpu_custom_call.1} parent=1 // pred_check_branch
      %12 = sbr.rel (0) target = $region5
    $region4: #{tpu_custom_call.1} parent=1 // pred_region
      %s14 = ssub.s32 16, 16
      %15 = vsyncadd [#allocation3], %s14
      %s17 = sshll.u32 [#allocation2], 4
      %s18 = int_to_ptr.vmem [resolvable:$true] %s17
      %20 = dma.hbm_to_vmem [thread:$0]  %s0, 16, %s18, [#allocation3]
    $region5: #{tpu_custom_call.1} parent=1 // pred_fallthru
      _
    // Predicated region
    $region6: #{tpu_custom_call.1} parent=1 // pred_check
      _
    $region7: #{tpu_custom_call.1} parent=1 // pred_check_branch
      %22 = sbr.rel (0) target = $region9
    $region8: #{tpu_custom_call.1} parent=1 // pred_region
      _
    $region9: #{tpu_custom_call.1} parent=1 // pred_fallthru
      _
    // Predicated region
    $region10: #{tpu_custom_call.1} parent=1 // pred_check
      _
    $region11: #{tpu_custom_call.1} parent=1 // pred_check_branch
      %24 = sbr.rel (0) target = $region13
    $region12: #{tpu_custom_call.1} parent=1 // pred_region
      %s26 = ssub.s32 256, 256
      %27 = vsyncadd [#allocation6], %s26
      %s28 = sshll.u32 [#allocation5], 4
      %s29 = int_to_ptr.vmem [resolvable:$true] %s28
      %34 = dma.hbm_to_vmem [thread:$0]  %s2, 256, %s29, [#allocation6], 128, 128, 8
    $region13: #{tpu_custom_call.1} parent=1 // pred_fallthru
      _
    // Predicated region
    $region14: #{tpu_custom_call.1} parent=1 // pred_check
      _
    $region15: #{tpu_custom_call.1} parent=1 // pred_check_branch
      %36 = sbr.rel (0) target = $region17
    $region16: #{tpu_custom_call.1} parent=1 // pred_region
      %37 = dma.done [#allocation3], 16
    $region17: #{tpu_custom_call.1} parent=1 // pred_fallthru
      _
    // Predicated region
    $region18: #{tpu_custom_call.1} parent=1 // pred_check
      _
    $region19: #{tpu_custom_call.1} parent=1 // pred_check_branch
      %39 = sbr.rel (0) target = $region21
    $region20: #{tpu_custom_call.1} parent=1 // pred_region
      %40 = dma.done [#allocation6], 256
    $region21: #{tpu_custom_call.1} parent=1 // pred_fallthru
      _
    %v41 = vlaneseq
    %v42 = vshrl.u32 %v41, 7
    %s43 = smul.u32 0, 8
    %v44 = vstv %s43
    %v45 = vadd.s32 %v42, %v44
    %v46 = vcvt.s32.f32 %v45
    %v47 = vld [vmem:[#allocation2] sm:$0x1]
    %v49 = vlaneseq
    %v50 = vshrl.u32 %v49, 7
    %v51 = vsub.s32 0, %v50
    %v52 = vrot.slane %v47, %v51
    %v54 = vmul.f32 %v46, %v52
    %v55 = vld [vmem:[%s1] sm:$0x1]
    %v57 = vlaneseq
    %v58 = vshrl.u32 %v57, 7
    %v59 = vsub.s32 0, %v58
    %v60 = vrot.slane %v55, %v59
    %v62 = vadd.f32 %v54, %v60
    %v63 = vand.u32 2147483647, %v62
    %vm64 = vcmp.le.f32.partialorder %v63, 0.7853982
    %vm65 = vcmp.lt.s32.totalorder %v62, 0
    %v66 = vand.u32 %v62, 2139095040
    %v67 = vshrl.u32 %v66, 23
    %v68 = vsub.s32 %v67, 127
    %v69 = vand.u32 2147483647, %v62
    %v70 = vand.u32 %v69, 8388607
    %v71 = vor.u32 %v70, 8388608
    %v72 = vsub.s32 0, %v71
    %v73 = vadd.s32 %v68, 1
    %vm74 = vcmp.gt.s32.totalorder %v73, 0
    %v75 = vsel %vm74, %v73, 0
    %v76 = vshrl.u32 %v75, 5
    %v77 = vand.u32 %v75, 31
    %v78 = vsub.s32 32, %v77
    %v79 = vshrl.u32 683565275, %v78
    %v80 = vshll.u32 683565275, %v77
    %v81 = vshrl.u32 2475754826, %v78
    %v82 = vor.u32 %v80, %v81
    %v83 = vshll.u32 2475754826, %v77
    %v84 = vshrl.u32 2131351028, %v78
    %v85 = vor.u32 %v83, %v84
    %v86 = vshll.u32 2131351028, %v77
    %v87 = vshrl.u32 2102212464, %v78
    %v88 = vor.u32 %v86, %v87
    %v89 = vshll.u32 2102212464, %v77
    %v90 = vshrl.u32 920167782, %v78
    %v91 = vor.u32 %v89, %v90
    %v92 = vshll.u32 920167782, %v77
    %v93 = vshrl.u32 1326507024, %v78
    %v94 = vor.u32 %v92, %v93
    %vm95 = vcmp.lt.s32.totalorder %v76, 1
    %vm96 = vcmp.lt.s32.totalorder %v76, 2
    %vm97 = vcmp.lt.s32.totalorder %v76, 3
    %vm98 = vcmp.lt.s32.totalorder %v76, 4
    %v99 = vsel %vm95, %v79, %v82
    %v100 = vsel %vm98, %v88, 2102212464
    %v101 = vsel %vm97, %v85, %v100
    %v102 = vsel %vm96, %v99, %v101
    %v103 = vsel %vm95, %v82, %v85
    %v104 = vsel %vm98, %v91, 920167782
    %v105 = vsel %vm97, %v88, %v104
    %v106 = vsel %vm96, %v103, %v105
    %v107 = vsel %vm95, %v85, %v88
    %v108 = vsel %vm98, %v94, 1326507024
    %v109 = vsel %vm97, %v91, %v108
    %v110 = vsel %vm96, %v107, %v109
    %v111 = vshll.u32 %v71, 8
    %v112 = vmul.u32.u64.compose %v111, %v110
    %v113 = vextract.low.u32 %v112
    %v114 = vextract.high.u32 %v112
    %v115 = vmul.u32.u64.compose %v111, %v106
    %v116 = vextract.low.u32 %v115
    %v117 = vextract.high.u32 %v115
    %v118 = vmul.u32 %v111, %v102
    %v119 = vadd.s32 %v114, %v116
    %vm120 = vc.u32 %v114, %v116
    %v121 = vadd.s32 %v117, 1
    %v122 = vsel %vm120, %v121, %v117
    %v123 = vadd.s32 %v118, %v122
    %v124 = vadd.s32 %v123, 536870912
    %v125 = vshrl.u32 %v124, 30
    %v126 = vshll.u32 %v125, 30
    %v127 = vsub.s32 %v123, %v126
    %vm128 = vcmp.lt.s32.totalorder %v127, 0
    %v129 = vsub.s32 0, %v127
    %v130 = vsel %vm128, %v129, %v127
    %v131 = vclz %v130
    %v132 = vsub.s32 %v131, 2
    %vm133 = vcmp.gt.s32.totalorder 0, %v132
    %v134 = vsel %vm133, 0, %v132
    %v135 = vsub.s32 32, %v134
    %v136 = vshll.u32 %v127, %v134
    %v137 = vshrl.u32 %v119, %v135
    %v138 = vor.u32 %v136, %v137
    %v139 = vsub.s32 4294967266, %v134
    %v140 = vadd.s32 %v139, 127
    %v141 = vshll.u32 %v140, 23
    %v142 = vor.u32 4788187, %v141
    %v143 = vand.u32 2147483647, %v142
    %v145 = vcvt.s32.f32 %v138
    %v146 = vmul.f32 %v145, %v143
    %v147 = vxor.u32 %v146, 2147483648
    %v148 = vsel %vm65, %v147, %v146
    %v149 = vsub.s32 4, %v125
    %v150 = vsel %vm65, %v149, %v125
    %v151 = vsel %vm64, %v62, %v148
    %v152 = vsel %vm64, 0, %v150
    %v153 = vcosq.f32.pop %v151
    %v154 = vsinq.f32.pop %v151
    %vm155 = vweird.f32 %v62
    %v156 = vadd.s32 %v152, 3
    %v157 = vand.u32 %v156, 3
    %vm158 = vcmp.lt.s32.totalorder %v157, 2
    %vm159 = vcmp.eq.s32.totalorder %v157, 0
    %v160 = vxor.u32 %v154, 2147483648
    %v161 = vsel %vm159, %v153, %v160
    %vm162 = vcmp.eq.s32.totalorder %v157, 2
    %v163 = vxor.u32 %v153, 2147483648
    %v164 = vsel %vm162, %v163, %v154
    %v165 = vsel %vm158, %v161, %v164
    %v166 = vsel %vm155, nan, %v165
    %v167 = vld [vmem:[#allocation5] sm:$0xff]
    %v168 = vld [vmem:[#allocation5 + $0x8] sm:$0xff]
    %v169 = vadd.f32 %v167, %v166
    %v170 = vadd.f32 %v168, %v166
    %vm171 = vcmask 261120
    %172 = vst.msk [vmem:[#allocation7] sm:$0xff] %vm171, %v169
    %173 = vst.msk [vmem:[#allocation7 + $0x8] sm:$0xff] %vm171, %v170
    // Predicated region
    $region22: #{tpu_custom_call.1} parent=1 // pred_check
      _
    $region23: #{tpu_custom_call.1} parent=1 // pred_check_branch
      %175 = sbr.rel (0) target = $region25
    $region24: #{tpu_custom_call.1} parent=1 // pred_region
      %s177 = ssub.s32 256, 256
      %178 = vsyncadd [#allocation4], %s177
      %s179 = sshll.u32 [#allocation7], 4
      %s180 = int_to_ptr.vmem [resolvable:$true] %s179
      %185 = dma.vmem_to_hbm [thread:$0]  %s180, 256, %s3, [#allocation4], 128, 128, 8
    $region25: #{tpu_custom_call.1} parent=1 // pred_fallthru
      _
    // Predicated region
    $region26: #{tpu_custom_call.1} parent=1 // pred_check
      _
    $region27: #{tpu_custom_call.1} parent=1 // pred_check_branch
      %187 = sbr.rel (0) target = $region29
    $region28: #{tpu_custom_call.1} parent=1 // pred_region
      %188 = dma.done [#allocation4], 256
    $region29: #{tpu_custom_call.1} parent=1 // pred_fallthru
      _
    %189 = vsyncpa [#allocation3], 1
    %190 = vsyncpa [#allocation6], 1
    %191 = vsyncpa [#allocation4], 1

</llo_original>
